<compile_context>
chip_gen: v7x
topology: tpu7x:2x2x1
jax: 0.10.0
libtpu: 0.0.40
codegen_flags: <defaults>
</compile_context>

<pallas_src>
import math

import jax
import jax.numpy as jnp
from jax.experimental import pallas as pl
from jax.experimental.pallas import tpu as pltpu


_TARGET_LANE_WIDTH = 1024   # preferred folded lane width (multiple of 128)


def _dyt_kernel(alpha_ref, gamma_ref, beta_ref, x_ref, o_ref):
    # alpha_ref: SMEM (1,) f32 scalar
    # gamma_ref / beta_ref: VMEM (1, tc) f32
    # x_ref / o_ref: VMEM (tm, tc) in the I/O dtype
    alpha = alpha_ref[0]
    gamma = gamma_ref[...]                      # already f32, hoisted once
    beta = beta_ref[...]
    x = x_ref[...].astype(jnp.float32)          # f32 math (v5e EUP/VPU)
    y = gamma * jnp.tanh(alpha * x) + beta      # VPU mul/add + EUP tanh
    o_ref[...] = y.astype(o_ref.dtype)


def _vmem_budget():
    """Generation-aware VMEM budget/limit (bytes) for the pipelined buffers."""
    try:
        cap = getattr(pltpu.get_tpu_info(), "vmem_capacity_bytes", 64 << 20)
    except Exception:
        cap = 64 << 20                  # conservative fallback (v7x per-TC)
    budget = cap // 2                   # 2x in + 2x out double buffers
    limit = (cap * 3) // 4              # scoped limit, leave headroom
    return budget, limit


def _choose_fold(M, C):
    """Return (G, pad_rows): fold factor for lane-dense packing, or (1, 0)."""
    if C % 128 == 0:
        return 1, 0                     # already lane-dense
    g0 = math.lcm(C, 128) // C          # minimal fold making lanes % 128 == 0
    kmax = max(1, _TARGET_LANE_WIDTH // (g0 * C))
    # Prefer the largest fold (<= target lane width) that divides M exactly
    # (reshape is then a free view, no padding copy).
    for k in range(kmax, 0, -1):
        g = g0 * k
        if M % g == 0:
            return g, 0
    # Otherwise pad M (at most G-1 rows) — only when the pad fraction is small.
    for g in (g0 * kmax, g0):
        pad = (-M) % g
        if pad * 4 <= M:
            return g, pad
    return 1, 0                         # fall back to the masked-store path


def _choose_tiles(m_rows, c_cols, itemsize, budget):
    """Pick (tm, tc) so 2x(in)+2x(out) double-buffers stay in the budget."""
    # Column (lane) tile: full width unless even an 8-row block blows VMEM,
    # or C is not a multiple of 128 (un-foldable case must use full width).
    if c_cols % 128 != 0 or 8 * 4 * c_cols * itemsize <= budget:
        tc = c_cols
    else:
        tc = (budget // (32 * itemsize)) // 128 * 128
        tc = max(128, min(tc, (c_cols // 128) * 128))
    # Row tile: largest that fits the byte budget (no artificial cap).
    per_row = 4 * tc * itemsize          # 2 x-bufs + 2 out-bufs per row
    tm = max(8, budget // per_row)
    tm = min(tm, m_rows)
    if tm < m_rows:
        tm = max(8, (tm // 8) * 8)       # keep blocks sublane-aligned
    # v7x has 2 TensorCores: keep >= 2 row blocks on the "parallel" axis so
    # both cores get work (one extra ~0.35us step on 1-TC chips, negligible).
    if tm >= m_rows and m_rows >= 16:
        tm = min(m_rows, ((pl.cdiv(m_rows, 2) + 7) // 8) * 8)
    return tm, tc


def dyt_forward(x, alpha, gamma, beta):
    """y = gamma * tanh(alpha * x) + beta, broadcast over the last dim of x."""
    orig_shape = x.shape
    C = orig_shape[-1]
    x2d = x.reshape(-1, C)
    M = x2d.shape[0]

    gamma_w = gamma.astype(jnp.float32)          # params stay f32 end-to-end
    beta_w = beta.astype(jnp.float32)
    Cw, Mp, G, pad_rows = C, M, *_choose_fold(M, C)

    if G > 1:
        if pad_rows:
            # One extra input copy; only taken when pad_rows is a small
            # fraction of M (see _choose_fold).
            x2d = jnp.pad(x2d, ((0, pad_rows), (0, 0)))
        Mp = x2d.shape[0] // G
        x2d = x2d.reshape(Mp, G * C)             # free view: lane-dense blocks
        gamma_w = jnp.tile(gamma_w, G)
        beta_w = jnp.tile(beta_w, G)
        Cw = G * C

    budget, vmem_limit = _vmem_budget()
    tm, tc = _choose_tiles(Mp, Cw, x2d.dtype.itemsize, budget)

    gamma2d = gamma_w.reshape(1, Cw)
    beta2d = beta_w.reshape(1, Cw)
    alpha_s = alpha.reshape(1).astype(jnp.float32)   # SMEM scalar

    grid = (pl.cdiv(Mp, tm), pl.cdiv(Cw, tc))

    out = pl.pallas_call(
        _dyt_kernel,
        out_shape=jax.ShapeDtypeStruct((Mp, Cw), x2d.dtype),
        grid_spec=pltpu.PrefetchScalarGridSpec(
            num_scalar_prefetch=0,
            grid=grid,
            in_specs=[
                pl.BlockSpec(memory_space=pltpu.MemorySpace.SMEM),   # alpha
                pl.BlockSpec((1, tc), lambda i, j: (0, j)),          # gamma
                pl.BlockSpec((1, tc), lambda i, j: (0, j)),          # beta
                pl.BlockSpec((tm, tc), lambda i, j: (i, j)),         # x
            ],
            out_specs=pl.BlockSpec((tm, tc), lambda i, j: (i, j)),
        ),
        compiler_params=pltpu.CompilerParams(
            dimension_semantics=("parallel", "parallel"),
            vmem_limit_bytes=vmem_limit,
        ),
    )(alpha_s, gamma2d, beta2d, x2d)

    if G > 1:
        out = out.reshape(Mp * G, C)
        if pad_rows:
            out = out[:M]
    return out.reshape(orig_shape)


def dyt_reference(x, alpha, gamma, beta):
    return gamma * jnp.tanh(alpha[0] * x) + beta


if __name__ == "__main__":
    # Small shapes consistent with the module: batch=2, seq=8, hidden C=32.
    B, N, C = 2, 8, 32
    key = jax.random.PRNGKey(0)
    x = jax.random.normal(key, (B, N, C), dtype=jnp.float32)

    # Deterministic parameter init matching DyT.__init__ (init_alpha=0.5).
    alpha = jnp.full((1,), 0.5, dtype=jnp.float32)
    gamma = jnp.ones((C,), dtype=jnp.float32)
    beta = jnp.zeros((C,), dtype=jnp.float32)

    y = dyt_forward(x, alpha, gamma, beta)
    y = jax.block_until_ready(y)

    y_ref = dyt_reference(x, alpha, gamma, beta)
    assert y.shape == x.shape
    assert jnp.allclose(y, y_ref, atol=1e-5, rtol=1e-5)
    print("KERNEL_OK")
</pallas_src>

<mosaic_0001>
module attributes {stable_mosaic.version = 11 : i64} {
  func.func @_dyt_kernel(%arg0: i32, %arg1: i32, %arg2: memref<1xf32, #tpu.memory_space<smem>>, %arg3: memref<1x512xf32, #tpu.memory_space<vmem>>, %arg4: memref<1x512xf32, #tpu.memory_space<vmem>>, %arg5: memref<1x512xf32, #tpu.memory_space<vmem>>, %arg6: memref<1x512xf32, #tpu.memory_space<vmem>>) attributes {dimension_semantics = [#tpu.dimension_semantics<parallel>, #tpu.dimension_semantics<parallel>], iteration_bounds = array<i64: 1, 1>, scalar_prefetch = 0 : i64, scratch_operands = 0 : i64, tpu.core_type = #tpu.core_type<tc>, window_params = [{transform_indices = @transform_0, window_bounds = array<i64: 1>}, {transform_indices = @transform_1, window_bounds = array<i64: 1, 512>}, {transform_indices = @transform_2, window_bounds = array<i64: 1, 512>}, {transform_indices = @transform_3, window_bounds = array<i64: 1, 512>}, {transform_indices = @transform_4, window_bounds = array<i64: 1, 512>}]} {
    %c0 = arith.constant 0 : index
    %0 = memref.load %arg2[%c0] : memref<1xf32, #tpu.memory_space<smem>>
    %c0_0 = arith.constant 0 : index
    %c0_1 = arith.constant 0 : index
    %1 = vector.load %arg3[%c0_0, %c0_1] : memref<1x512xf32, #tpu.memory_space<vmem>>, vector<1x512xf32>
    %c0_2 = arith.constant 0 : index
    %c0_3 = arith.constant 0 : index
    %2 = vector.load %arg4[%c0_2, %c0_3] : memref<1x512xf32, #tpu.memory_space<vmem>>, vector<1x512xf32>
    %c0_4 = arith.constant 0 : index
    %c0_5 = arith.constant 0 : index
    %3 = vector.load %arg5[%c0_4, %c0_5] : memref<1x512xf32, #tpu.memory_space<vmem>>, vector<1x512xf32>
    %4 = vector.broadcast %0 : f32 to vector<1x512xf32>
    %5 = arith.mulf %4, %3 : vector<1x512xf32>
    %6 = math.tanh %5 : vector<1x512xf32>
    %7 = arith.mulf %1, %6 : vector<1x512xf32>
    %8 = arith.addf %7, %2 : vector<1x512xf32>
    %c0_6 = arith.constant 0 : index
    %c0_7 = arith.constant 0 : index
    %9 = vector.load %arg6[%c0_6, %c0_7] : memref<1x512xf32, #tpu.memory_space<vmem>>, vector<1x512xf32>
    tpu.vector_store %arg6[%c0_6, %c0_7], %8 {strides = array<i32>} : memref<1x512xf32, #tpu.memory_space<vmem>>, vector<1x512xf32>,
    return
  }
  func.func @transform_0(%arg0: i32, %arg1: i32) -> i32 {
    %c0_i32 = arith.constant 0 : i32
    %c0_i32_0 = arith.constant 0 : i32
    return %c0_i32 : i32
  }
  func.func @transform_1(%arg0: i32, %arg1: i32) -> (i32, i32) {
    %c0_i32 = arith.constant 0 : i32
    %c0_i32_0 = arith.constant 0 : i32
    return %c0_i32, %arg1 : i32, i32
  }
  func.func @transform_2(%arg0: i32, %arg1: i32) -> (i32, i32) {
    %c0_i32 = arith.constant 0 : i32
    %c0_i32_0 = arith.constant 0 : i32
    return %c0_i32, %arg1 : i32, i32
  }
  func.func @transform_3(%arg0: i32, %arg1: i32) -> (i32, i32) {
    %c0_i32 = arith.constant 0 : i32
    return %arg0, %arg1 : i32, i32
  }
  func.func @transform_4(%arg0: i32, %arg1: i32) -> (i32, i32) {
    %c0_i32 = arith.constant 0 : i32
    return %arg0, %arg1 : i32, i32
  }
}

</mosaic_0001>

<llo_original>
// kernel: tpu_custom_call.1
$region0: #{tpu_custom_call.1}
  #allocation0 [shape = 'u32[]', space=smem, size = 0x4, offset = 0x4, fixed_abs, tag = 'smem constant byte address 0x4 - core index']
  #allocation1 [shape = 'u32[144,128]{1,0:T(1,128)}', space=vmem, size = 0x12000, scoped, tag = 'internal scratch']
  #allocation2 [shape = 'f32[1]{0:T(128)S(6)}', space=smem, size = 0x200, scoped, tag = 'scoped memory for tpu_custom_call.1']
  %s0 = inlined_call_operand.<no memory space> [shape: f32[1], index: 0, kind: input, shape index: {}]
  %s1 = inlined_call_operand.hbm [shape: f32[1,512], index: 1, kind: input, shape index: {}]
  %s2 = inlined_call_operand.vmem [shape: f32[1,512], index: 2, kind: input, shape index: {}]
  %s3 = inlined_call_operand.vmem [shape: f32[1,512], index: 3, kind: input, shape index: {}]
  %s4 = inlined_call_operand.hbm [shape: f32[1,512], index: 4, kind: output, shape index: {}]
  %s5 = sld [smem:[#allocation0]]
  $region30: #{tpu_custom_call.1} parent=0
    _
  %s7 = ssub.s32 1, %s5
  %s8 = scalar_select 0, %s7, %s5
  %9 = sst [smem:[#allocation2]] %s0
  $region1: #{tpu_custom_call.1} parent=0
    #allocation3 [shape = 'u8[2048]{0}', space=vmem, size = 0x800, scoped, tag = 'input window, operand 1, single buffered']
    #allocation4 [shape = 's32[1]{0}', space=sflag, size = 0x4, scoped, tag = 'scoped memory for tpu_custom_call.1']
    #allocation5 [shape = 's32[1]{0}', space=sflag, size = 0x4, scoped, tag = 'scoped memory for tpu_custom_call.1']
    #allocation6 [shape = 'u8[2048]{0}', space=vmem, size = 0x800, scoped, tag = 'output window, operand 0, single buffered']
    %10 = vsyncpa [#allocation4], 0
    %11 = vsyncpa [#allocation5], 0
    // Predicated region
    $region2: #{tpu_custom_call.1} parent=1 // pred_check
      _
    $region3: #{tpu_custom_call.1} parent=1 // pred_check_branch
      %13 = sbr.rel (0) target = $region5
    $region4: #{tpu_custom_call.1} parent=1 // pred_region
      _
    $region5: #{tpu_custom_call.1} parent=1 // pred_fallthru
      _
    // Predicated region
    $region6: #{tpu_custom_call.1} parent=1 // pred_check
      _
    $region7: #{tpu_custom_call.1} parent=1 // pred_check_branch
      %15 = sbr.rel (0) target = $region9
    $region8: #{tpu_custom_call.1} parent=1 // pred_region
      %s17 = ssub.s32 64, 64
      %18 = vsyncadd [#allocation4], %s17
      %s20 = sshll.u32 [#allocation3], 4
      %s21 = int_to_ptr.vmem [resolvable:$true] %s20
      %23 = dma.hbm_to_vmem [thread:$0]  %s1, 64, %s21, [#allocation4]
    $region9: #{tpu_custom_call.1} parent=1 // pred_fallthru
      _
    // Predicated region
    $region10: #{tpu_custom_call.1} parent=1 // pred_check
      _
    $region11: #{tpu_custom_call.1} parent=1 // pred_check_branch
      %25 = sbr.rel (0) target = $region13
    $region12: #{tpu_custom_call.1} parent=1 // pred_region
      _
    $region13: #{tpu_custom_call.1} parent=1 // pred_fallthru
      _
    // Predicated region
    $region14: #{tpu_custom_call.1} parent=1 // pred_check
      _
    $region15: #{tpu_custom_call.1} parent=1 // pred_check_branch
      %27 = sbr.rel (0) target = $region17
    $region16: #{tpu_custom_call.1} parent=1 // pred_region
      _
    $region17: #{tpu_custom_call.1} parent=1 // pred_fallthru
      _
    // Predicated region
    $region18: #{tpu_custom_call.1} parent=1 // pred_check
      _
    $region19: #{tpu_custom_call.1} parent=1 // pred_check_branch
      %29 = sbr.rel (0) target = $region21
    $region20: #{tpu_custom_call.1} parent=1 // pred_region
      %30 = dma.done [#allocation4], 64
    $region21: #{tpu_custom_call.1} parent=1 // pred_fallthru
      _
    %s31 = sld [smem:[#allocation2]]
    %v32 = vld [vmem:[#allocation3] sm:$0xf]
    %v33 = vld [vmem:[%s2] sm:$0xf]
    %v34 = vld [vmem:[%s3] sm:$0xf]
    %v35 = vstv %s31
    %v36 = vmul.f32 %v35, %v34
    %v37 = vtanh.pop %v36
    %v38 = vmul.f32 %v32, %v37
    %v39 = vadd.f32 %v38, %v33
    %v40 = vlaneseq
    %vm41 = vcmp.ge.s32.totalorder %v40, 0
    %vm42 = vcmp.lt.s32.totalorder %v40, 512
    %vm43 = vmand %vm41, %vm42
    %44 = vst.msk [vmem:[#allocation6] sm:$0xf] %vm43, %v39
    // Predicated region
    $region22: #{tpu_custom_call.1} parent=1 // pred_check
      _
    $region23: #{tpu_custom_call.1} parent=1 // pred_check_branch
      %46 = sbr.rel (0) target = $region25
    $region24: #{tpu_custom_call.1} parent=1 // pred_region
      %s48 = ssub.s32 64, 64
      %49 = vsyncadd [#allocation5], %s48
      %s51 = sshll.u32 [#allocation6], 4
      %s52 = int_to_ptr.vmem [resolvable:$true] %s51
      %54 = dma.vmem_to_hbm [thread:$0]  %s52, 64, %s4, [#allocation5]
    $region25: #{tpu_custom_call.1} parent=1 // pred_fallthru
      _
    // Predicated region
    $region26: #{tpu_custom_call.1} parent=1 // pred_check
      _
    $region27: #{tpu_custom_call.1} parent=1 // pred_check_branch
      %56 = sbr.rel (0) target = $region29
    $region28: #{tpu_custom_call.1} parent=1 // pred_region
      %57 = dma.done [#allocation5], 64
    $region29: #{tpu_custom_call.1} parent=1 // pred_fallthru
      _
    %58 = vsyncpa [#allocation4], 1
    %59 = vsyncpa [#allocation5], 1

</llo_original>
